<compile_context>
chip_gen: v7x
topology: tpu7x:2x2x1
jax: 0.10.0
libtpu: 0.0.40
codegen_flags: <defaults>
</compile_context>

<pallas_src>
import jax
import jax.numpy as jnp
from jax.experimental import pallas as pl
from jax.experimental.pallas import tpu as pltpu

EPS = 1e-5
K = 3      # conv3x3: Conv1d(kernel_size=3, padding=1, bias=False)
PAD = 1


def _conv3_bn(xpad_ref, w_ref, g_ref, b_ref, n, cin, cout, L, inv_nl):
    """3-tap conv (halo already in xpad_ref) + training-mode BN, vectorized over
    output channels.  Returns the normalized, not-yet-activated (N, Cout, L)."""
    acc = jnp.zeros((n, cout, L), jnp.float32)
    for c in range(cin):
        for k in range(K):
            j = c * K + k
            tap = xpad_ref[:, c:c + 1, k:k + L]        # (N,1,L)   lane-shifted load
            wcol = w_ref[:, j:j + 1]                   # (Cout,1)  sublane weight column
            acc = acc + tap * wcol[None, :, :]         # broadcast FMA on (N,Cout,L) slab
    # per-channel biased batch statistics over (N, L)
    s = jnp.sum(acc, axis=2, keepdims=True)            # (N,Cout,1)  lane reduce
    mean = jnp.sum(s, axis=0, keepdims=True) * inv_nl  # (1,Cout,1)  cross-batch add
    d = acc - mean
    s2 = jnp.sum(d * d, axis=2, keepdims=True)
    var = jnp.sum(s2, axis=0, keepdims=True) * inv_nl  # (1,Cout,1)
    return d * jax.lax.rsqrt(var + EPS) * g_ref[...] + b_ref[...]


def basic_block3x3_kernel(x_ref, w1_ref, g1_ref, b1_ref, w2_ref, g2_ref, b2_ref,
                          o_ref, xpad_scr, hpad_scr):
    N, C, L = x_ref.shape
    P = o_ref.shape[1]
    inv_nl = 1.0 / (N * L)

    # ---- zero padded scratches once (halo columns must be zero), place x -----
    xpad_scr[...] = jnp.zeros_like(xpad_scr)
    hpad_scr[...] = jnp.zeros_like(hpad_scr)
    xpad_scr[:, :, PAD:PAD + L] = x_ref[...]

    # ---- conv1 -> bn1 (training-mode batch stats) -> SiLU --------------------
    h = _conv3_bn(xpad_scr, w1_ref, g1_ref, b1_ref, N, C, P, L, inv_nl)
    h = h * jax.nn.sigmoid(h)                          # SiLU
    hpad_scr[:, :, PAD:PAD + L] = h                    # one store of the whole slab

    # ---- conv2 -> bn2 -> +residual -> SiLU ------------------------------------
    h2 = _conv3_bn(hpad_scr, w2_ref, g2_ref, b2_ref, N, P, P, L, inv_nl)
    out = h2 + x_ref[...]                              # residual (inplanes == planes)
    o_ref[...] = out * jax.nn.sigmoid(out)             # single full-tile store


def basic_block3x3(x_ncl, w1, g1, b1, w2, g2, b2):
    """x_ncl: (N, C, L) float32 (PyTorch Conv1d layout). Returns (N, P, L)."""
    x = x_ncl.astype(jnp.float32)
    N, C, L = x.shape
    P = w1.shape[0]
    assert P == C, "downsample=None path requires inplanes == planes"
    assert w1.shape == (P, C, K) and w2.shape == (P, P, K)

    w1_m = w1.reshape(P, C * K).astype(jnp.float32)     # (P, C*K) VMEM weight matrix
    w2_m = w2.reshape(P, P * K).astype(jnp.float32)     # (P, P*K)
    g1v = g1.reshape(1, P, 1).astype(jnp.float32)       # broadcast-ready gamma/beta
    b1v = b1.reshape(1, P, 1).astype(jnp.float32)
    g2v = g2.reshape(1, P, 1).astype(jnp.float32)
    b2v = b2.reshape(1, P, 1).astype(jnp.float32)

    vmem = pl.BlockSpec(memory_space=pltpu.MemorySpace.VMEM)

    cost = pl.CostEstimate(
        flops=2 * 2 * K * N * L * C * P,                 # two convs, MAC = 2 flops
        transcendentals=2 * N * L * P,                   # two SiLU sigmoids
        bytes_accessed=4 * (x.size + N * P * L + w1_m.size + w2_m.size + 4 * P),
    )

    return pl.pallas_call(
        basic_block3x3_kernel,
        out_shape=jax.ShapeDtypeStruct((N, P, L), jnp.float32),
        in_specs=[vmem] * 7,
        out_specs=vmem,
        scratch_shapes=[
            pltpu.VMEM((N, C, L + 2 * PAD), jnp.float32),   # zero-padded input
            pltpu.VMEM((N, P, L + 2 * PAD), jnp.float32),   # zero-padded conv1 output
        ],
        cost_estimate=cost,
    )(x, w1_m, g1v, b1v, w2_m, g2v, b2v)


def _reference(x, w1, g1, b1, w2, g2, b2):
    """Pure-JAX reference of the PyTorch forward (training-mode BN)."""
    def conv(t, w):
        return jax.lax.conv_general_dilated(
            t, w, window_strides=(1,), padding=((PAD, PAD),),
            dimension_numbers=("NCH", "OIH", "NCH"))

    def bn(h, g, b):
        mean = jnp.mean(h, axis=(0, 2), keepdims=True)
        var = jnp.mean((h - mean) ** 2, axis=(0, 2), keepdims=True)
        return (h - mean) * jax.lax.rsqrt(var + EPS) * g.reshape(1, -1, 1) + b.reshape(1, -1, 1)

    silu = lambda t: t * jax.nn.sigmoid(t)
    h = silu(bn(conv(x, w1), g1, b1))
    h2 = bn(conv(h, w2), g2, b2)
    return silu(h2 + x)


if __name__ == "__main__":
    # Small shapes consistent with the module: N=2, inplanes3=planes=4, L=16.
    N, C, L, P = 2, 4, 16, 4
    key = jax.random.PRNGKey(0)
    kx, kw1, kw2 = jax.random.split(key, 3)

    x = jax.random.normal(kx, (N, C, L), dtype=jnp.float32)

    # PyTorch Conv1d weight shape: (out_channels, in_channels, kernel_size)
    w1 = 0.1 * jax.random.normal(kw1, (P, C, K), dtype=jnp.float32)
    w2 = 0.1 * jax.random.normal(kw2, (P, P, K), dtype=jnp.float32)
    # BatchNorm1d default init: weight (gamma) = 1, bias (beta) = 0
    g1 = jnp.ones((P,), jnp.float32)
    b1 = jnp.zeros((P,), jnp.float32)
    g2 = jnp.ones((P,), jnp.float32)
    b2 = jnp.zeros((P,), jnp.float32)

    out = basic_block3x3(x, w1, g1, b1, w2, g2, b2)
    jax.block_until_ready(out)
    assert out.shape == (N, P, L)

    ref = _reference(x, w1, g1, b1, w2, g2, b2)
    max_err = float(jnp.max(jnp.abs(out - ref)))
    assert max_err < 1e-3, f"mismatch vs reference: {max_err}"

    print("KERNEL_OK")
</pallas_src>

<mosaic_0001>
module attributes {stable_mosaic.version = 11 : i64} {
  func.func @basic_block3x3_kernel(%arg0: memref<2x4x16xf32, #tpu.memory_space<vmem>>, %arg1: memref<4x12xf32, #tpu.memory_space<vmem>>, %arg2: memref<1x4x1xf32, #tpu.memory_space<vmem>>, %arg3: memref<1x4x1xf32, #tpu.memory_space<vmem>>, %arg4: memref<4x12xf32, #tpu.memory_space<vmem>>, %arg5: memref<1x4x1xf32, #tpu.memory_space<vmem>>, %arg6: memref<1x4x1xf32, #tpu.memory_space<vmem>>, %arg7: memref<2x4x16xf32, #tpu.memory_space<vmem>>, %arg8: memref<2x4x18xf32, #tpu.memory_space<vmem>>, %arg9: memref<2x4x18xf32, #tpu.memory_space<vmem>>) attributes {dimension_semantics = [], scalar_prefetch = 0 : i64, scratch_operands = 2 : i64, tpu.core_type = #tpu.core_type<tc>} {
    %cst = arith.constant 0.000000e+00 : f32
    %0 = vector.broadcast %cst : f32 to vector<2x4x18xf32>
    %c0 = arith.constant 0 : index
    %c0_0 = arith.constant 0 : index
    %c0_1 = arith.constant 0 : index
    %1 = vector.load %arg8[%c0, %c0_0, %c0_1] : memref<2x4x18xf32, #tpu.memory_space<vmem>>, vector<2x4x18xf32>
    tpu.vector_store %arg8[%c0, %c0_0, %c0_1], %0 {strides = array<i32>} : memref<2x4x18xf32, #tpu.memory_space<vmem>>, vector<2x4x18xf32>,
    %cst_2 = arith.constant 0.000000e+00 : f32
    %2 = vector.broadcast %cst_2 : f32 to vector<2x4x18xf32>
    %c0_3 = arith.constant 0 : index
    %c0_4 = arith.constant 0 : index
    %c0_5 = arith.constant 0 : index
    %3 = vector.load %arg9[%c0_3, %c0_4, %c0_5] : memref<2x4x18xf32, #tpu.memory_space<vmem>>, vector<2x4x18xf32>
    tpu.vector_store %arg9[%c0_3, %c0_4, %c0_5], %2 {strides = array<i32>} : memref<2x4x18xf32, #tpu.memory_space<vmem>>, vector<2x4x18xf32>,
    %c0_6 = arith.constant 0 : index
    %c0_7 = arith.constant 0 : index
    %c0_8 = arith.constant 0 : index
    %4 = vector.load %arg0[%c0_6, %c0_7, %c0_8] : memref<2x4x16xf32, #tpu.memory_space<vmem>>, vector<2x4x16xf32>
    %c0_9 = arith.constant 0 : index
    %c0_10 = arith.constant 0 : index
    %c1 = arith.constant 1 : index
    %5 = vector.load %arg8[%c0_9, %c0_10, %c1] : memref<2x4x18xf32, #tpu.memory_space<vmem>>, vector<2x4x16xf32>
    tpu.vector_store %arg8[%c0_9, %c0_10, %c1], %4 {strides = array<i32>} : memref<2x4x18xf32, #tpu.memory_space<vmem>>, vector<2x4x16xf32>,
    %cst_11 = arith.constant 0.000000e+00 : f32
    %6 = vector.broadcast %cst_11 : f32 to vector<2x4x16xf32>
    %c0_12 = arith.constant 0 : index
    %c0_13 = arith.constant 0 : index
    %c0_14 = arith.constant 0 : index
    %7 = vector.load %arg8[%c0_12, %c0_13, %c0_14] : memref<2x4x18xf32, #tpu.memory_space<vmem>>, vector<2x1x16xf32>
    %c0_15 = arith.constant 0 : index
    %c0_16 = arith.constant 0 : index
    %8 = vector.load %arg1[%c0_15, %c0_16] : memref<4x12xf32, #tpu.memory_space<vmem>>, vector<4x1xf32>
    %9 = vector.shape_cast %8 : vector<4x1xf32> to vector<1x4x1xf32>
    %10 = vector.broadcast %7 : vector<2x1x16xf32> to vector<2x4x16xf32>
    %11 = vector.broadcast %9 : vector<1x4x1xf32> to vector<2x4x16xf32>
    %12 = arith.mulf %10, %11 : vector<2x4x16xf32>
    %13 = arith.addf %6, %12 : vector<2x4x16xf32>
    %c0_17 = arith.constant 0 : index
    %c0_18 = arith.constant 0 : index
    %c1_19 = arith.constant 1 : index
    %14 = vector.load %arg8[%c0_17, %c0_18, %c1_19] : memref<2x4x18xf32, #tpu.memory_space<vmem>>, vector<2x1x16xf32>
    %c0_20 = arith.constant 0 : index
    %c1_21 = arith.constant 1 : index
    %15 = vector.load %arg1[%c0_20, %c1_21] : memref<4x12xf32, #tpu.memory_space<vmem>>, vector<4x1xf32>
    %16 = vector.shape_cast %15 : vector<4x1xf32> to vector<1x4x1xf32>
    %17 = vector.broadcast %14 : vector<2x1x16xf32> to vector<2x4x16xf32>
    %18 = vector.broadcast %16 : vector<1x4x1xf32> to vector<2x4x16xf32>
    %19 = arith.mulf %17, %18 : vector<2x4x16xf32>
    %20 = arith.addf %13, %19 : vector<2x4x16xf32>
    %c0_22 = arith.constant 0 : index
    %c0_23 = arith.constant 0 : index
    %c2 = arith.constant 2 : index
    %21 = vector.load %arg8[%c0_22, %c0_23, %c2] : memref<2x4x18xf32, #tpu.memory_space<vmem>>, vector<2x1x16xf32>
    %c0_24 = arith.constant 0 : index
    %c2_25 = arith.constant 2 : index
    %22 = vector.load %arg1[%c0_24, %c2_25] : memref<4x12xf32, #tpu.memory_space<vmem>>, vector<4x1xf32>
    %23 = vector.shape_cast %22 : vector<4x1xf32> to vector<1x4x1xf32>
    %24 = vector.broadcast %21 : vector<2x1x16xf32> to vector<2x4x16xf32>
    %25 = vector.broadcast %23 : vector<1x4x1xf32> to vector<2x4x16xf32>
    %26 = arith.mulf %24, %25 : vector<2x4x16xf32>
    %27 = arith.addf %20, %26 : vector<2x4x16xf32>
    %c0_26 = arith.constant 0 : index
    %c1_27 = arith.constant 1 : index
    %c0_28 = arith.constant 0 : index
    %28 = vector.load %arg8[%c0_26, %c1_27, %c0_28] : memref<2x4x18xf32, #tpu.memory_space<vmem>>, vector<2x1x16xf32>
    %c0_29 = arith.constant 0 : index
    %c3 = arith.constant 3 : index
    %29 = vector.load %arg1[%c0_29, %c3] : memref<4x12xf32, #tpu.memory_space<vmem>>, vector<4x1xf32>
    %30 = vector.shape_cast %29 : vector<4x1xf32> to vector<1x4x1xf32>
    %31 = vector.broadcast %28 : vector<2x1x16xf32> to vector<2x4x16xf32>
    %32 = vector.broadcast %30 : vector<1x4x1xf32> to vector<2x4x16xf32>
    %33 = arith.mulf %31, %32 : vector<2x4x16xf32>
    %34 = arith.addf %27, %33 : vector<2x4x16xf32>
    %c0_30 = arith.constant 0 : index
    %c1_31 = arith.constant 1 : index
    %c1_32 = arith.constant 1 : index
    %35 = vector.load %arg8[%c0_30, %c1_31, %c1_32] : memref<2x4x18xf32, #tpu.memory_space<vmem>>, vector<2x1x16xf32>
    %c0_33 = arith.constant 0 : index
    %c4 = arith.constant 4 : index
    %36 = vector.load %arg1[%c0_33, %c4] : memref<4x12xf32, #tpu.memory_space<vmem>>, vector<4x1xf32>
    %37 = vector.shape_cast %36 : vector<4x1xf32> to vector<1x4x1xf32>
    %38 = vector.broadcast %35 : vector<2x1x16xf32> to vector<2x4x16xf32>
    %39 = vector.broadcast %37 : vector<1x4x1xf32> to vector<2x4x16xf32>
    %40 = arith.mulf %38, %39 : vector<2x4x16xf32>
    %41 = arith.addf %34, %40 : vector<2x4x16xf32>
    %c0_34 = arith.constant 0 : index
    %c1_35 = arith.constant 1 : index
    %c2_36 = arith.constant 2 : index
    %42 = vector.load %arg8[%c0_34, %c1_35, %c2_36] : memref<2x4x18xf32, #tpu.memory_space<vmem>>, vector<2x1x16xf32>
    %c0_37 = arith.constant 0 : index
    %c5 = arith.constant 5 : index
    %43 = vector.load %arg1[%c0_37, %c5] : memref<4x12xf32, #tpu.memory_space<vmem>>, vector<4x1xf32>
    %44 = vector.shape_cast %43 : vector<4x1xf32> to vector<1x4x1xf32>
    %45 = vector.broadcast %42 : vector<2x1x16xf32> to vector<2x4x16xf32>
    %46 = vector.broadcast %44 : vector<1x4x1xf32> to vector<2x4x16xf32>
    %47 = arith.mulf %45, %46 : vector<2x4x16xf32>
    %48 = arith.addf %41, %47 : vector<2x4x16xf32>
    %c0_38 = arith.constant 0 : index
    %c2_39 = arith.constant 2 : index
    %c0_40 = arith.constant 0 : index
    %49 = vector.load %arg8[%c0_38, %c2_39, %c0_40] : memref<2x4x18xf32, #tpu.memory_space<vmem>>, vector<2x1x16xf32>
    %c0_41 = arith.constant 0 : index
    %c6 = arith.constant 6 : index
    %50 = vector.load %arg1[%c0_41, %c6] : memref<4x12xf32, #tpu.memory_space<vmem>>, vector<4x1xf32>
    %51 = vector.shape_cast %50 : vector<4x1xf32> to vector<1x4x1xf32>
    %52 = vector.broadcast %49 : vector<2x1x16xf32> to vector<2x4x16xf32>
    %53 = vector.broadcast %51 : vector<1x4x1xf32> to vector<2x4x16xf32>
    %54 = arith.mulf %52, %53 : vector<2x4x16xf32>
    %55 = arith.addf %48, %54 : vector<2x4x16xf32>
    %c0_42 = arith.constant 0 : index
    %c2_43 = arith.constant 2 : index
    %c1_44 = arith.constant 1 : index
    %56 = vector.load %arg8[%c0_42, %c2_43, %c1_44] : memref<2x4x18xf32, #tpu.memory_space<vmem>>, vector<2x1x16xf32>
    %c0_45 = arith.constant 0 : index
    %c7 = arith.constant 7 : index
    %57 = vector.load %arg1[%c0_45, %c7] : memref<4x12xf32, #tpu.memory_space<vmem>>, vector<4x1xf32>
    %58 = vector.shape_cast %57 : vector<4x1xf32> to vector<1x4x1xf32>
    %59 = vector.broadcast %56 : vector<2x1x16xf32> to vector<2x4x16xf32>
    %60 = vector.broadcast %58 : vector<1x4x1xf32> to vector<2x4x16xf32>
    %61 = arith.mulf %59, %60 : vector<2x4x16xf32>
    %62 = arith.addf %55, %61 : vector<2x4x16xf32>
    %c0_46 = arith.constant 0 : index
    %c2_47 = arith.constant 2 : index
    %c2_48 = arith.constant 2 : index
    %63 = vector.load %arg8[%c0_46, %c2_47, %c2_48] : memref<2x4x18xf32, #tpu.memory_space<vmem>>, vector<2x1x16xf32>
    %c0_49 = arith.constant 0 : index
    %c8 = arith.constant 8 : index
    %64 = vector.load %arg1[%c0_49, %c8] : memref<4x12xf32, #tpu.memory_space<vmem>>, vector<4x1xf32>
    %65 = vector.shape_cast %64 : vector<4x1xf32> to vector<1x4x1xf32>
    %66 = vector.broadcast %63 : vector<2x1x16xf32> to vector<2x4x16xf32>
    %67 = vector.broadcast %65 : vector<1x4x1xf32> to vector<2x4x16xf32>
    %68 = arith.mulf %66, %67 : vector<2x4x16xf32>
    %69 = arith.addf %62, %68 : vector<2x4x16xf32>
    %c0_50 = arith.constant 0 : index
    %c3_51 = arith.constant 3 : index
    %c0_52 = arith.constant 0 : index
    %70 = vector.load %arg8[%c0_50, %c3_51, %c0_52] : memref<2x4x18xf32, #tpu.memory_space<vmem>>, vector<2x1x16xf32>
    %c0_53 = arith.constant 0 : index
    %c9 = arith.constant 9 : index
    %71 = vector.load %arg1[%c0_53, %c9] : memref<4x12xf32, #tpu.memory_space<vmem>>, vector<4x1xf32>
    %72 = vector.shape_cast %71 : vector<4x1xf32> to vector<1x4x1xf32>
    %73 = vector.broadcast %70 : vector<2x1x16xf32> to vector<2x4x16xf32>
    %74 = vector.broadcast %72 : vector<1x4x1xf32> to vector<2x4x16xf32>
    %75 = arith.mulf %73, %74 : vector<2x4x16xf32>
    %76 = arith.addf %69, %75 : vector<2x4x16xf32>
    %c0_54 = arith.constant 0 : index
    %c3_55 = arith.constant 3 : index
    %c1_56 = arith.constant 1 : index
    %77 = vector.load %arg8[%c0_54, %c3_55, %c1_56] : memref<2x4x18xf32, #tpu.memory_space<vmem>>, vector<2x1x16xf32>
    %c0_57 = arith.constant 0 : index
    %c10 = arith.constant 10 : index
    %78 = vector.load %arg1[%c0_57, %c10] : memref<4x12xf32, #tpu.memory_space<vmem>>, vector<4x1xf32>
    %79 = vector.shape_cast %78 : vector<4x1xf32> to vector<1x4x1xf32>
    %80 = vector.broadcast %77 : vector<2x1x16xf32> to vector<2x4x16xf32>
    %81 = vector.broadcast %79 : vector<1x4x1xf32> to vector<2x4x16xf32>
    %82 = arith.mulf %80, %81 : vector<2x4x16xf32>
    %83 = arith.addf %76, %82 : vector<2x4x16xf32>
    %c0_58 = arith.constant 0 : index
    %c3_59 = arith.constant 3 : index
    %c2_60 = arith.constant 2 : index
    %84 = vector.load %arg8[%c0_58, %c3_59, %c2_60] : memref<2x4x18xf32, #tpu.memory_space<vmem>>, vector<2x1x16xf32>
    %c0_61 = arith.constant 0 : index
    %c11 = arith.constant 11 : index
    %85 = vector.load %arg1[%c0_61, %c11] : memref<4x12xf32, #tpu.memory_space<vmem>>, vector<4x1xf32>
    %86 = vector.shape_cast %85 : vector<4x1xf32> to vector<1x4x1xf32>
    %87 = vector.broadcast %84 : vector<2x1x16xf32> to vector<2x4x16xf32>
    %88 = vector.broadcast %86 : vector<1x4x1xf32> to vector<2x4x16xf32>
    %89 = arith.mulf %87, %88 : vector<2x4x16xf32>
    %90 = arith.addf %83, %89 : vector<2x4x16xf32>
    %cst_62 = arith.constant dense<0.000000e+00> : vector<2x4xf32>
    %91 = vector.multi_reduction <add>, %90, %cst_62 [2] : vector<2x4x16xf32> to vector<2x4xf32>
    %92 = vector.shape_cast %91 : vector<2x4xf32> to vector<2x4x1xf32>
    %cst_63 = arith.constant dense<0.000000e+00> : vector<4x1xf32>
    %93 = vector.multi_reduction <add>, %92, %cst_63 [0] : vector<2x4x1xf32> to vector<4x1xf32>
    %94 = vector.shape_cast %93 : vector<4x1xf32> to vector<1x4x1xf32>
    %cst_64 = arith.constant 3.125000e-02 : f32
    %95 = vector.broadcast %cst_64 : f32 to vector<1x4x1xf32>
    %96 = arith.mulf %94, %95 : vector<1x4x1xf32>
    %97 = vector.broadcast %96 : vector<1x4x1xf32> to vector<2x4x16xf32>
    %98 = arith.subf %90, %97 : vector<2x4x16xf32>
    %99 = arith.mulf %98, %98 : vector<2x4x16xf32>
    %cst_65 = arith.constant dense<0.000000e+00> : vector<2x4xf32>
    %100 = vector.multi_reduction <add>, %99, %cst_65 [2] : vector<2x4x16xf32> to vector<2x4xf32>
    %101 = vector.shape_cast %100 : vector<2x4xf32> to vector<2x4x1xf32>
    %cst_66 = arith.constant dense<0.000000e+00> : vector<4x1xf32>
    %102 = vector.multi_reduction <add>, %101, %cst_66 [0] : vector<2x4x1xf32> to vector<4x1xf32>
    %103 = vector.shape_cast %102 : vector<4x1xf32> to vector<1x4x1xf32>
    %cst_67 = arith.constant 3.125000e-02 : f32
    %104 = vector.broadcast %cst_67 : f32 to vector<1x4x1xf32>
    %105 = arith.mulf %103, %104 : vector<1x4x1xf32>
    %cst_68 = arith.constant 9.99999974E-6 : f32
    %106 = vector.broadcast %cst_68 : f32 to vector<1x4x1xf32>
    %107 = arith.addf %105, %106 : vector<1x4x1xf32>
    %108 = math.rsqrt %107 : vector<1x4x1xf32>
    %109 = vector.broadcast %108 : vector<1x4x1xf32> to vector<2x4x16xf32>
    %110 = arith.mulf %98, %109 : vector<2x4x16xf32>
    %c0_69 = arith.constant 0 : index
    %c0_70 = arith.constant 0 : index
    %c0_71 = arith.constant 0 : index
    %111 = vector.load %arg2[%c0_69, %c0_70, %c0_71] : memref<1x4x1xf32, #tpu.memory_space<vmem>>, vector<1x4x1xf32>
    %112 = vector.broadcast %111 : vector<1x4x1xf32> to vector<2x4x16xf32>
    %113 = arith.mulf %110, %112 : vector<2x4x16xf32>
    %c0_72 = arith.constant 0 : index
    %c0_73 = arith.constant 0 : index
    %c0_74 = arith.constant 0 : index
    %114 = vector.load %arg3[%c0_72, %c0_73, %c0_74] : memref<1x4x1xf32, #tpu.memory_space<vmem>>, vector<1x4x1xf32>
    %115 = vector.broadcast %114 : vector<1x4x1xf32> to vector<2x4x16xf32>
    %116 = arith.addf %113, %115 : vector<2x4x16xf32>
    %117 = arith.negf %116 : vector<2x4x16xf32>
    %118 = math.exp %117 : vector<2x4x16xf32>
    %cst_75 = arith.constant 1.000000e+00 : f32
    %119 = vector.broadcast %cst_75 : f32 to vector<2x4x16xf32>
    %120 = arith.addf %119, %118 : vector<2x4x16xf32>
    %121 = arith.divf %119, %120 : vector<2x4x16xf32>
    %122 = arith.mulf %116, %121 : vector<2x4x16xf32>
    %c0_76 = arith.constant 0 : index
    %c0_77 = arith.constant 0 : index
    %c1_78 = arith.constant 1 : index
    %123 = vector.load %arg9[%c0_76, %c0_77, %c1_78] : memref<2x4x18xf32, #tpu.memory_space<vmem>>, vector<2x4x16xf32>
    tpu.vector_store %arg9[%c0_76, %c0_77, %c1_78], %122 {strides = array<i32>} : memref<2x4x18xf32, #tpu.memory_space<vmem>>, vector<2x4x16xf32>,
    %cst_79 = arith.constant 0.000000e+00 : f32
    %124 = vector.broadcast %cst_79 : f32 to vector<2x4x16xf32>
    %c0_80 = arith.constant 0 : index
    %c0_81 = arith.constant 0 : index
    %c0_82 = arith.constant 0 : index
    %125 = vector.load %arg9[%c0_80, %c0_81, %c0_82] : memref<2x4x18xf32, #tpu.memory_space<vmem>>, vector<2x1x16xf32>
    %c0_83 = arith.constant 0 : index
    %c0_84 = arith.constant 0 : index
    %126 = vector.load %arg4[%c0_83, %c0_84] : memref<4x12xf32, #tpu.memory_space<vmem>>, vector<4x1xf32>
    %127 = vector.shape_cast %126 : vector<4x1xf32> to vector<1x4x1xf32>
    %128 = vector.broadcast %125 : vector<2x1x16xf32> to vector<2x4x16xf32>
    %129 = vector.broadcast %127 : vector<1x4x1xf32> to vector<2x4x16xf32>
    %130 = arith.mulf %128, %129 : vector<2x4x16xf32>
    %131 = arith.addf %124, %130 : vector<2x4x16xf32>
    %c0_85 = arith.constant 0 : index
    %c0_86 = arith.constant 0 : index
    %c1_87 = arith.constant 1 : index
    %132 = vector.load %arg9[%c0_85, %c0_86, %c1_87] : memref<2x4x18xf32, #tpu.memory_space<vmem>>, vector<2x1x16xf32>
    %c0_88 = arith.constant 0 : index
    %c1_89 = arith.constant 1 : index
    %133 = vector.load %arg4[%c0_88, %c1_89] : memref<4x12xf32, #tpu.memory_space<vmem>>, vector<4x1xf32>
    %134 = vector.shape_cast %133 : vector<4x1xf32> to vector<1x4x1xf32>
    %135 = vector.broadcast %132 : vector<2x1x16xf32> to vector<2x4x16xf32>
    %136 = vector.broadcast %134 : vector<1x4x1xf32> to vector<2x4x16xf32>
    %137 = arith.mulf %135, %136 : vector<2x4x16xf32>
    %138 = arith.addf %131, %137 : vector<2x4x16xf32>
    %c0_90 = arith.constant 0 : index
    %c0_91 = arith.constant 0 : index
    %c2_92 = arith.constant 2 : index
    %139 = vector.load %arg9[%c0_90, %c0_91, %c2_92] : memref<2x4x18xf32, #tpu.memory_space<vmem>>, vector<2x1x16xf32>
    %c0_93 = arith.constant 0 : index
    %c2_94 = arith.constant 2 : index
    %140 = vector.load %arg4[%c0_93, %c2_94] : memref<4x12xf32, #tpu.memory_space<vmem>>, vector<4x1xf32>
    %141 = vector.shape_cast %140 : vector<4x1xf32> to vector<1x4x1xf32>
    %142 = vector.broadcast %139 : vector<2x1x16xf32> to vector<2x4x16xf32>
    %143 = vector.broadcast %141 : vector<1x4x1xf32> to vector<2x4x16xf32>
    %144 = arith.mulf %142, %143 : vector<2x4x16xf32>
    %145 = arith.addf %138, %144 : vector<2x4x16xf32>
    %c0_95 = arith.constant 0 : index
    %c1_96 = arith.constant 1 : index
    %c0_97 = arith.constant 0 : index
    %146 = vector.load %arg9[%c0_95, %c1_96, %c0_97] : memref<2x4x18xf32, #tpu.memory_space<vmem>>, vector<2x1x16xf32>
    %c0_98 = arith.constant 0 : index
    %c3_99 = arith.constant 3 : index
    %147 = vector.load %arg4[%c0_98, %c3_99] : memref<4x12xf32, #tpu.memory_space<vmem>>, vector<4x1xf32>
    %148 = vector.shape_cast %147 : vector<4x1xf32> to vector<1x4x1xf32>
    %149 = vector.broadcast %146 : vector<2x1x16xf32> to vector<2x4x16xf32>
    %150 = vector.broadcast %148 : vector<1x4x1xf32> to vector<2x4x16xf32>
    %151 = arith.mulf %149, %150 : vector<2x4x16xf32>
    %152 = arith.addf %145, %151 : vector<2x4x16xf32>
    %c0_100 = arith.constant 0 : index
    %c1_101 = arith.constant 1 : index
    %c1_102 = arith.constant 1 : index
    %153 = vector.load %arg9[%c0_100, %c1_101, %c1_102] : memref<2x4x18xf32, #tpu.memory_space<vmem>>, vector<2x1x16xf32>
    %c0_103 = arith.constant 0 : index
    %c4_104 = arith.constant 4 : index
    %154 = vector.load %arg4[%c0_103, %c4_104] : memref<4x12xf32, #tpu.memory_space<vmem>>, vector<4x1xf32>
    %155 = vector.shape_cast %154 : vector<4x1xf32> to vector<1x4x1xf32>
    %156 = vector.broadcast %153 : vector<2x1x16xf32> to vector<2x4x16xf32>
    %157 = vector.broadcast %155 : vector<1x4x1xf32> to vector<2x4x16xf32>
    %158 = arith.mulf %156, %157 : vector<2x4x16xf32>
    %159 = arith.addf %152, %158 : vector<2x4x16xf32>
    %c0_105 = arith.constant 0 : index
    %c1_106 = arith.constant 1 : index
    %c2_107 = arith.constant 2 : index
    %160 = vector.load %arg9[%c0_105, %c1_106, %c2_107] : memref<2x4x18xf32, #tpu.memory_space<vmem>>, vector<2x1x16xf32>
    %c0_108 = arith.constant 0 : index
    %c5_109 = arith.constant 5 : index
    %161 = vector.load %arg4[%c0_108, %c5_109] : memref<4x12xf32, #tpu.memory_space<vmem>>, vector<4x1xf32>
    %162 = vector.shape_cast %161 : vector<4x1xf32> to vector<1x4x1xf32>
    %163 = vector.broadcast %160 : vector<2x1x16xf32> to vector<2x4x16xf32>
    %164 = vector.broadcast %162 : vector<1x4x1xf32> to vector<2x4x16xf32>
    %165 = arith.mulf %163, %164 : vector<2x4x16xf32>
    %166 = arith.addf %159, %165 : vector<2x4x16xf32>
    %c0_110 = arith.constant 0 : index
    %c2_111 = arith.constant 2 : index
    %c0_112 = arith.constant 0 : index
    %167 = vector.load %arg9[%c0_110, %c2_111, %c0_112] : memref<2x4x18xf32, #tpu.memory_space<vmem>>, vector<2x1x16xf32>
    %c0_113 = arith.constant 0 : index
    %c6_114 = arith.constant 6 : index
    %168 = vector.load %arg4[%c0_113, %c6_114] : memref<4x12xf32, #tpu.memory_space<vmem>>, vector<4x1xf32>
    %169 = vector.shape_cast %168 : vector<4x1xf32> to vector<1x4x1xf32>
    %170 = vector.broadcast %167 : vector<2x1x16xf32> to vector<2x4x16xf32>
    %171 = vector.broadcast %169 : vector<1x4x1xf32> to vector<2x4x16xf32>
    %172 = arith.mulf %170, %171 : vector<2x4x16xf32>
    %173 = arith.addf %166, %172 : vector<2x4x16xf32>
    %c0_115 = arith.constant 0 : index
    %c2_116 = arith.constant 2 : index
    %c1_117 = arith.constant 1 : index
    %174 = vector.load %arg9[%c0_115, %c2_116, %c1_117] : memref<2x4x18xf32, #tpu.memory_space<vmem>>, vector<2x1x16xf32>
    %c0_118 = arith.constant 0 : index
    %c7_119 = arith.constant 7 : index
    %175 = vector.load %arg4[%c0_118, %c7_119] : memref<4x12xf32, #tpu.memory_space<vmem>>, vector<4x1xf32>
    %176 = vector.shape_cast %175 : vector<4x1xf32> to vector<1x4x1xf32>
    %177 = vector.broadcast %174 : vector<2x1x16xf32> to vector<2x4x16xf32>
    %178 = vector.broadcast %176 : vector<1x4x1xf32> to vector<2x4x16xf32>
    %179 = arith.mulf %177, %178 : vector<2x4x16xf32>
    %180 = arith.addf %173, %179 : vector<2x4x16xf32>
    %c0_120 = arith.constant 0 : index
    %c2_121 = arith.constant 2 : index
    %c2_122 = arith.constant 2 : index
    %181 = vector.load %arg9[%c0_120, %c2_121, %c2_122] : memref<2x4x18xf32, #tpu.memory_space<vmem>>, vector<2x1x16xf32>
    %c0_123 = arith.constant 0 : index
    %c8_124 = arith.constant 8 : index
    %182 = vector.load %arg4[%c0_123, %c8_124] : memref<4x12xf32, #tpu.memory_space<vmem>>, vector<4x1xf32>
    %183 = vector.shape_cast %182 : vector<4x1xf32> to vector<1x4x1xf32>
    %184 = vector.broadcast %181 : vector<2x1x16xf32> to vector<2x4x16xf32>
    %185 = vector.broadcast %183 : vector<1x4x1xf32> to vector<2x4x16xf32>
    %186 = arith.mulf %184, %185 : vector<2x4x16xf32>
    %187 = arith.addf %180, %186 : vector<2x4x16xf32>
    %c0_125 = arith.constant 0 : index
    %c3_126 = arith.constant 3 : index
    %c0_127 = arith.constant 0 : index
    %188 = vector.load %arg9[%c0_125, %c3_126, %c0_127] : memref<2x4x18xf32, #tpu.memory_space<vmem>>, vector<2x1x16xf32>
    %c0_128 = arith.constant 0 : index
    %c9_129 = arith.constant 9 : index
    %189 = vector.load %arg4[%c0_128, %c9_129] : memref<4x12xf32, #tpu.memory_space<vmem>>, vector<4x1xf32>
    %190 = vector.shape_cast %189 : vector<4x1xf32> to vector<1x4x1xf32>
    %191 = vector.broadcast %188 : vector<2x1x16xf32> to vector<2x4x16xf32>
    %192 = vector.broadcast %190 : vector<1x4x1xf32> to vector<2x4x16xf32>
    %193 = arith.mulf %191, %192 : vector<2x4x16xf32>
    %194 = arith.addf %187, %193 : vector<2x4x16xf32>
    %c0_130 = arith.constant 0 : index
    %c3_131 = arith.constant 3 : index
    %c1_132 = arith.constant 1 : index
    %195 = vector.load %arg9[%c0_130, %c3_131, %c1_132] : memref<2x4x18xf32, #tpu.memory_space<vmem>>, vector<2x1x16xf32>
    %c0_133 = arith.constant 0 : index
    %c10_134 = arith.constant 10 : index
    %196 = vector.load %arg4[%c0_133, %c10_134] : memref<4x12xf32, #tpu.memory_space<vmem>>, vector<4x1xf32>
    %197 = vector.shape_cast %196 : vector<4x1xf32> to vector<1x4x1xf32>
    %198 = vector.broadcast %195 : vector<2x1x16xf32> to vector<2x4x16xf32>
    %199 = vector.broadcast %197 : vector<1x4x1xf32> to vector<2x4x16xf32>
    %200 = arith.mulf %198, %199 : vector<2x4x16xf32>
    %201 = arith.addf %194, %200 : vector<2x4x16xf32>
    %c0_135 = arith.constant 0 : index
    %c3_136 = arith.constant 3 : index
    %c2_137 = arith.constant 2 : index
    %202 = vector.load %arg9[%c0_135, %c3_136, %c2_137] : memref<2x4x18xf32, #tpu.memory_space<vmem>>, vector<2x1x16xf32>
    %c0_138 = arith.constant 0 : index
    %c11_139 = arith.constant 11 : index
    %203 = vector.load %arg4[%c0_138, %c11_139] : memref<4x12xf32, #tpu.memory_space<vmem>>, vector<4x1xf32>
    %204 = vector.shape_cast %203 : vector<4x1xf32> to vector<1x4x1xf32>
    %205 = vector.broadcast %202 : vector<2x1x16xf32> to vector<2x4x16xf32>
    %206 = vector.broadcast %204 : vector<1x4x1xf32> to vector<2x4x16xf32>
    %207 = arith.mulf %205, %206 : vector<2x4x16xf32>
    %208 = arith.addf %201, %207 : vector<2x4x16xf32>
    %cst_140 = arith.constant dense<0.000000e+00> : vector<2x4xf32>
    %209 = vector.multi_reduction <add>, %208, %cst_140 [2] : vector<2x4x16xf32> to vector<2x4xf32>
    %210 = vector.shape_cast %209 : vector<2x4xf32> to vector<2x4x1xf32>
    %cst_141 = arith.constant dense<0.000000e+00> : vector<4x1xf32>
    %211 = vector.multi_reduction <add>, %210, %cst_141 [0] : vector<2x4x1xf32> to vector<4x1xf32>
    %212 = vector.shape_cast %211 : vector<4x1xf32> to vector<1x4x1xf32>
    %cst_142 = arith.constant 3.125000e-02 : f32
    %213 = vector.broadcast %cst_142 : f32 to vector<1x4x1xf32>
    %214 = arith.mulf %212, %213 : vector<1x4x1xf32>
    %215 = vector.broadcast %214 : vector<1x4x1xf32> to vector<2x4x16xf32>
    %216 = arith.subf %208, %215 : vector<2x4x16xf32>
    %217 = arith.mulf %216, %216 : vector<2x4x16xf32>
    %cst_143 = arith.constant dense<0.000000e+00> : vector<2x4xf32>
    %218 = vector.multi_reduction <add>, %217, %cst_143 [2] : vector<2x4x16xf32> to vector<2x4xf32>
    %219 = vector.shape_cast %218 : vector<2x4xf32> to vector<2x4x1xf32>
    %cst_144 = arith.constant dense<0.000000e+00> : vector<4x1xf32>
    %220 = vector.multi_reduction <add>, %219, %cst_144 [0] : vector<2x4x1xf32> to vector<4x1xf32>
    %221 = vector.shape_cast %220 : vector<4x1xf32> to vector<1x4x1xf32>
    %cst_145 = arith.constant 3.125000e-02 : f32
    %222 = vector.broadcast %cst_145 : f32 to vector<1x4x1xf32>
    %223 = arith.mulf %221, %222 : vector<1x4x1xf32>
    %cst_146 = arith.constant 9.99999974E-6 : f32
    %224 = vector.broadcast %cst_146 : f32 to vector<1x4x1xf32>
    %225 = arith.addf %223, %224 : vector<1x4x1xf32>
    %226 = math.rsqrt %225 : vector<1x4x1xf32>
    %227 = vector.broadcast %226 : vector<1x4x1xf32> to vector<2x4x16xf32>
    %228 = arith.mulf %216, %227 : vector<2x4x16xf32>
    %c0_147 = arith.constant 0 : index
    %c0_148 = arith.constant 0 : index
    %c0_149 = arith.constant 0 : index
    %229 = vector.load %arg5[%c0_147, %c0_148, %c0_149] : memref<1x4x1xf32, #tpu.memory_space<vmem>>, vector<1x4x1xf32>
    %230 = vector.broadcast %229 : vector<1x4x1xf32> to vector<2x4x16xf32>
    %231 = arith.mulf %228, %230 : vector<2x4x16xf32>
    %c0_150 = arith.constant 0 : index
    %c0_151 = arith.constant 0 : index
    %c0_152 = arith.constant 0 : index
    %232 = vector.load %arg6[%c0_150, %c0_151, %c0_152] : memref<1x4x1xf32, #tpu.memory_space<vmem>>, vector<1x4x1xf32>
    %233 = vector.broadcast %232 : vector<1x4x1xf32> to vector<2x4x16xf32>
    %234 = arith.addf %231, %233 : vector<2x4x16xf32>
    %c0_153 = arith.constant 0 : index
    %c0_154 = arith.constant 0 : index
    %c0_155 = arith.constant 0 : index
    %235 = vector.load %arg0[%c0_153, %c0_154, %c0_155] : memref<2x4x16xf32, #tpu.memory_space<vmem>>, vector<2x4x16xf32>
    %236 = arith.addf %234, %235 : vector<2x4x16xf32>
    %237 = arith.negf %236 : vector<2x4x16xf32>
    %238 = math.exp %237 : vector<2x4x16xf32>
    %cst_156 = arith.constant 1.000000e+00 : f32
    %239 = vector.broadcast %cst_156 : f32 to vector<2x4x16xf32>
    %240 = arith.addf %239, %238 : vector<2x4x16xf32>
    %241 = arith.divf %239, %240 : vector<2x4x16xf32>
    %242 = arith.mulf %236, %241 : vector<2x4x16xf32>
    %c0_157 = arith.constant 0 : index
    %c0_158 = arith.constant 0 : index
    %c0_159 = arith.constant 0 : index
    %243 = vector.load %arg7[%c0_157, %c0_158, %c0_159] : memref<2x4x16xf32, #tpu.memory_space<vmem>>, vector<2x4x16xf32>
    tpu.vector_store %arg7[%c0_157, %c0_158, %c0_159], %242 {strides = array<i32>} : memref<2x4x16xf32, #tpu.memory_space<vmem>>, vector<2x4x16xf32>,
    return
  }
}

</mosaic_0001>

<llo_original>
// kernel: tpu_custom_call.1
$region0: #{tpu_custom_call.1}
  #allocation0 [shape = 'u32[]', space=smem, size = 0x4, offset = 0x4, fixed_abs, tag = 'smem constant byte address 0x4 - core index']
  #allocation1 [shape = 'u32[144,128]{1,0:T(1,128)}', space=vmem, size = 0x12000, scoped, tag = 'internal scratch']
  #allocation2 [shape = 'f32[2,4,18]{2,1,0:T(4,128)}', space=vmem, size = 0x1000, scoped, tag = 'scratch operand']
  #allocation3 [shape = 'f32[2,4,18]{2,1,0:T(4,128)}', space=vmem, size = 0x1000, scoped, tag = 'scratch operand']
  %s0 = inlined_call_operand.vmem [shape: f32[2,4,16], index: 0, kind: input, shape index: {}]
  %s1 = inlined_call_operand.vmem [shape: f32[4,12], index: 1, kind: input, shape index: {}]
  %s2 = inlined_call_operand.vmem [shape: f32[1,4,1], index: 2, kind: input, shape index: {}]
  %s3 = inlined_call_operand.vmem [shape: f32[1,4,1], index: 3, kind: input, shape index: {}]
  %s4 = inlined_call_operand.vmem [shape: f32[4,12], index: 4, kind: input, shape index: {}]
  %s5 = inlined_call_operand.vmem [shape: f32[1,4,1], index: 5, kind: input, shape index: {}]
  %s6 = inlined_call_operand.vmem [shape: f32[1,4,1], index: 6, kind: input, shape index: {}]
  %s7 = inlined_call_operand.hbm [shape: f32[2,4,16], index: 7, kind: output, shape index: {}]
  %s8 = sld [smem:[#allocation0]]
  $region38: #{tpu_custom_call.1} parent=0
    _
  %s10 = ssub.s32 1, %s8
  %s11 = scalar_select 0, %s10, %s8
  $region1: #{tpu_custom_call.1} parent=0
    #allocation4 [shape = 'u8[4096]{0}', space=vmem, size = 0x1000, scoped, tag = 'output window, operand 0, single buffered']
    #allocation5 [shape = 's32[1]{0}', space=sflag, size = 0x4, scoped, tag = 'scoped memory for tpu_custom_call.1']
    %12 = vsyncpa [#allocation5], 0
    // Predicated region
    $region2: #{tpu_custom_call.1} parent=1 // pred_check
      _
    $region3: #{tpu_custom_call.1} parent=1 // pred_check_branch
      %14 = sbr.rel (0) target = $region5
    $region4: #{tpu_custom_call.1} parent=1 // pred_region
      _
    $region5: #{tpu_custom_call.1} parent=1 // pred_fallthru
      _
    // Predicated region
    $region6: #{tpu_custom_call.1} parent=1 // pred_check
      _
    $region7: #{tpu_custom_call.1} parent=1 // pred_check_branch
      %16 = sbr.rel (0) target = $region9
    $region8: #{tpu_custom_call.1} parent=1 // pred_region
      _
    $region9: #{tpu_custom_call.1} parent=1 // pred_fallthru
      _
    // Predicated region
    $region10: #{tpu_custom_call.1} parent=1 // pred_check
      _
    $region11: #{tpu_custom_call.1} parent=1 // pred_check_branch
      %18 = sbr.rel (0) target = $region13
    $region12: #{tpu_custom_call.1} parent=1 // pred_region
      _
    $region13: #{tpu_custom_call.1} parent=1 // pred_fallthru
      _
    // Predicated region
    $region14: #{tpu_custom_call.1} parent=1 // pred_check
      _
    $region15: #{tpu_custom_call.1} parent=1 // pred_check_branch
      %20 = sbr.rel (0) target = $region17
    $region16: #{tpu_custom_call.1} parent=1 // pred_region
      _
    $region17: #{tpu_custom_call.1} parent=1 // pred_fallthru
      _
    // Predicated region
    $region18: #{tpu_custom_call.1} parent=1 // pred_check
      _
    $region19: #{tpu_custom_call.1} parent=1 // pred_check_branch
      %22 = sbr.rel (0) target = $region21
    $region20: #{tpu_custom_call.1} parent=1 // pred_region
      _
    $region21: #{tpu_custom_call.1} parent=1 // pred_fallthru
      _
    // Predicated region
    $region22: #{tpu_custom_call.1} parent=1 // pred_check
      _
    $region23: #{tpu_custom_call.1} parent=1 // pred_check_branch
      %24 = sbr.rel (0) target = $region25
    $region24: #{tpu_custom_call.1} parent=1 // pred_region
      _
    $region25: #{tpu_custom_call.1} parent=1 // pred_fallthru
      _
    // Predicated region
    $region26: #{tpu_custom_call.1} parent=1 // pred_check
      _
    $region27: #{tpu_custom_call.1} parent=1 // pred_check_branch
      %26 = sbr.rel (0) target = $region29
    $region28: #{tpu_custom_call.1} parent=1 // pred_region
      _
    $region29: #{tpu_custom_call.1} parent=1 // pred_fallthru
      _
    %vm27 = vcmask 142336
    %28 = vst.msk [vmem:[#allocation2] sm:$0xf] %vm27, 0.0
    %29 = vst.msk [vmem:[#allocation2 + $0x4] sm:$0xf] %vm27, 0.0
    %30 = vst.msk [vmem:[#allocation3] sm:$0xf] %vm27, 0.0
    %31 = vst.msk [vmem:[#allocation3 + $0x4] sm:$0xf] %vm27, 0.0
    %v32 = vld [vmem:[%s0] sm:$0xf]
    %v33 = vld [vmem:[%s0 + $0x4] sm:$0xf]
    %36 = vrot.lane.b32.xlu0 %v32, 1
    %v37 = vpop.permute.xlu0 %36
    %38 = vrot.lane.b32.xlu0 %v33, 1
    %v39 = vpop.permute.xlu0 %38
    %vm42 = vcmask 134152
    %43 = vst.msk [vmem:[#allocation2] sm:$0xf] %vm42, %v37
    %44 = vst.msk [vmem:[#allocation2 + $0x4] sm:$0xf] %vm42, %v39
    %v45 = vld [vmem:[#allocation2] sm:$0x1]
    %v46 = vld [vmem:[#allocation2 + $0x4] sm:$0x1]
    %v47 = vld [vmem:[%s1] sm:$0xf]
    %v48 = vlaneseq
    %v49 = vshrl.u32 %v48, 7
    %v50 = vsub.s32 0, %v49
    %v51 = vrot.slane %v45, %v50
    %v52 = vlaneseq
    %v53 = vshrl.u32 %v52, 7
    %v54 = vsub.s32 0, %v53
    %v55 = vrot.slane %v46, %v54
    %57 = vset.pattern.permute.xlu0 0
    %58 = vperm.xlu0 %57, %v47
    %v59 = vpop.permute.xlu0 %58
    %v61 = vmul.f32 %v51, %v59
    %v62 = vmul.f32 %v55, %v59
    %v63 = vadd.f32 %v61, 0.0
    %v64 = vadd.f32 %v62, 0.0
    %65 = vset.pattern.permute.xlu0 1
    %66 = vperm.xlu0 %65, %v47
    %v67 = vpop.permute.xlu0 %66
    %v69 = vmul.f32 %v51, %v67
    %v70 = vmul.f32 %v55, %v67
    %73 = vrot.lane.b32.xlu0 %v69, 127
    %v74 = vpop.permute.xlu0 %73
    %75 = vrot.lane.b32.xlu0 %v70, 127
    %v76 = vpop.permute.xlu0 %75
    %v79 = vadd.f32 %v63, %v74
    %v80 = vadd.f32 %v64, %v76
    %81 = vset.pattern.permute.xlu0 2
    %82 = vperm.xlu0 %81, %v47
    %v83 = vpop.permute.xlu0 %82
    %v85 = vmul.f32 %v51, %v83
    %v86 = vmul.f32 %v55, %v83
    %89 = vrot.lane.b32.xlu0 %v85, 126
    %v90 = vpop.permute.xlu0 %89
    %91 = vrot.lane.b32.xlu0 %v86, 126
    %v92 = vpop.permute.xlu0 %91
    %v95 = vadd.f32 %v79, %v90
    %v96 = vadd.f32 %v80, %v92
    %v97 = vld [vmem:[#allocation2 + $0x1] sm:$0x1]
    %v98 = vld [vmem:[#allocation2 + $0x5] sm:$0x1]
    %v99 = vlaneseq
    %v100 = vshrl.u32 %v99, 7
    %v101 = vsub.s32 0, %v100
    %v102 = vrot.slane %v97, %v101
    %v103 = vlaneseq
    %v104 = vshrl.u32 %v103, 7
    %v105 = vsub.s32 0, %v104
    %v106 = vrot.slane %v98, %v105
    %107 = vset.pattern.permute.xlu0 3
    %108 = vperm.xlu0 %107, %v47
    %v109 = vpop.permute.xlu0 %108
    %v111 = vmul.f32 %v102, %v109
    %v112 = vmul.f32 %v106, %v109
    %v113 = vadd.f32 %v95, %v111
    %v114 = vadd.f32 %v96, %v112
    %115 = vset.pattern.permute.xlu0 4
    %116 = vperm.xlu0 %115, %v47
    %v117 = vpop.permute.xlu0 %116
    %v119 = vmul.f32 %v102, %v117
    %v120 = vmul.f32 %v106, %v117
    %123 = vrot.lane.b32.xlu0 %v119, 127
    %v124 = vpop.permute.xlu0 %123
    %125 = vrot.lane.b32.xlu0 %v120, 127
    %v126 = vpop.permute.xlu0 %125
    %v129 = vadd.f32 %v113, %v124
    %v130 = vadd.f32 %v114, %v126
    %131 = vset.pattern.permute.xlu0 5
    %132 = vperm.xlu0 %131, %v47
    %v133 = vpop.permute.xlu0 %132
    %v135 = vmul.f32 %v102, %v133
    %v136 = vmul.f32 %v106, %v133
    %139 = vrot.lane.b32.xlu0 %v135, 126
    %v140 = vpop.permute.xlu0 %139
    %141 = vrot.lane.b32.xlu0 %v136, 126
    %v142 = vpop.permute.xlu0 %141
    %v145 = vadd.f32 %v129, %v140
    %v146 = vadd.f32 %v130, %v142
    %v147 = vld [vmem:[#allocation2 + $0x2] sm:$0x1]
    %v148 = vld [vmem:[#allocation2 + $0x6] sm:$0x1]
    %v149 = vlaneseq
    %v150 = vshrl.u32 %v149, 7
    %v151 = vsub.s32 0, %v150
    %v152 = vrot.slane %v147, %v151
    %v153 = vlaneseq
    %v154 = vshrl.u32 %v153, 7
    %v155 = vsub.s32 0, %v154
    %v156 = vrot.slane %v148, %v155
    %157 = vset.pattern.permute.xlu0 6
    %158 = vperm.xlu0 %157, %v47
    %v159 = vpop.permute.xlu0 %158
    %v161 = vmul.f32 %v152, %v159
    %v162 = vmul.f32 %v156, %v159
    %v163 = vadd.f32 %v145, %v161
    %v164 = vadd.f32 %v146, %v162
    %165 = vset.pattern.permute.xlu0 7
    %166 = vperm.xlu0 %165, %v47
    %v167 = vpop.permute.xlu0 %166
    %v169 = vmul.f32 %v152, %v167
    %v170 = vmul.f32 %v156, %v167
    %173 = vrot.lane.b32.xlu0 %v169, 127
    %v174 = vpop.permute.xlu0 %173
    %175 = vrot.lane.b32.xlu0 %v170, 127
    %v176 = vpop.permute.xlu0 %175
    %v179 = vadd.f32 %v163, %v174
    %v180 = vadd.f32 %v164, %v176
    %181 = vset.pattern.permute.xlu0 8
    %182 = vperm.xlu0 %181, %v47
    %v183 = vpop.permute.xlu0 %182
    %v185 = vmul.f32 %v152, %v183
    %v186 = vmul.f32 %v156, %v183
    %189 = vrot.lane.b32.xlu0 %v185, 126
    %v190 = vpop.permute.xlu0 %189
    %191 = vrot.lane.b32.xlu0 %v186, 126
    %v192 = vpop.permute.xlu0 %191
    %v195 = vadd.f32 %v179, %v190
    %v196 = vadd.f32 %v180, %v192
    %v197 = vld [vmem:[#allocation2 + $0x3] sm:$0x1]
    %v198 = vld [vmem:[#allocation2 + $0x7] sm:$0x1]
    %v199 = vlaneseq
    %v200 = vshrl.u32 %v199, 7
    %v201 = vsub.s32 0, %v200
    %v202 = vrot.slane %v197, %v201
    %v203 = vlaneseq
    %v204 = vshrl.u32 %v203, 7
    %v205 = vsub.s32 0, %v204
    %v206 = vrot.slane %v198, %v205
    %207 = vset.pattern.permute.xlu0 9
    %208 = vperm.xlu0 %207, %v47
    %v209 = vpop.permute.xlu0 %208
    %v211 = vmul.f32 %v202, %v209
    %v212 = vmul.f32 %v206, %v209
    %v213 = vadd.f32 %v195, %v211
    %v214 = vadd.f32 %v196, %v212
    %215 = vset.pattern.permute.xlu0 10
    %216 = vperm.xlu0 %215, %v47
    %v217 = vpop.permute.xlu0 %216
    %v219 = vmul.f32 %v202, %v217
    %v220 = vmul.f32 %v206, %v217
    %223 = vrot.lane.b32.xlu0 %v219, 127
    %v224 = vpop.permute.xlu0 %223
    %225 = vrot.lane.b32.xlu0 %v220, 127
    %v226 = vpop.permute.xlu0 %225
    %v229 = vadd.f32 %v213, %v224
    %v230 = vadd.f32 %v214, %v226
    %231 = vset.pattern.permute.xlu0 11
    %232 = vperm.xlu0 %231, %v47
    %v233 = vpop.permute.xlu0 %232
    %v235 = vmul.f32 %v202, %v233
    %v236 = vmul.f32 %v206, %v233
    %239 = vrot.lane.b32.xlu0 %v235, 126
    %v240 = vpop.permute.xlu0 %239
    %241 = vrot.lane.b32.xlu0 %v236, 126
    %v242 = vpop.permute.xlu0 %241
    %v245 = vadd.f32 %v229, %v240
    %v246 = vadd.f32 %v230, %v242
    %vm247 = vcmask 125952
    %v248 = vsel %vm247, %v245, 0.0
    %249 = vadd.xlane.f32.xlu0 %v248
    %v250 = vpop.xlane.xlu0 %249
    %v251 = vsel %vm247, %v246, 0.0
    %252 = vadd.xlane.f32.xlu0 %v251
    %v253 = vpop.xlane.xlu0 %252
    %vm254 = vcmask 1043456
    %v255 = vsel %vm254, %v250, 0.0
    %v256 = vsel %vm254, %v253, 0.0
    %v257 = vadd.f32 %v255, %v256
    %v258 = vmul.f32 %v257, 0.03125
    %v259 = vsub.f32 %v245, %v258
    %v260 = vsub.f32 %v246, %v258
    %v261 = vmul.f32 %v259, %v259
    %v262 = vmul.f32 %v260, %v260
    %v263 = vsel %vm247, %v261, 0.0
    %264 = vadd.xlane.f32.xlu0 %v263
    %v265 = vpop.xlane.xlu0 %264
    %v266 = vsel %vm247, %v262, 0.0
    %267 = vadd.xlane.f32.xlu0 %v266
    %v268 = vpop.xlane.xlu0 %267
    %v269 = vsel %vm254, %v265, 0.0
    %v270 = vsel %vm254, %v268, 0.0
    %v271 = vadd.f32 %v269, %v270
    %v272 = vmul.f32 %v271, 0.03125
    %v273 = vadd.f32 %v272, 1e-05
    %v274 = vrsqrt.pop %v273
    %v275 = vmul.f32 %v259, %v274
    %v276 = vmul.f32 %v260, %v274
    %v277 = vld [vmem:[%s2] sm:$0xf]
    %279 = vset.pattern.permute.xlu0 0
    %280 = vperm.xlu0 %279, %v277
    %v281 = vpop.permute.xlu0 %280
    %v283 = vmul.f32 %v275, %v281
    %v284 = vmul.f32 %v276, %v281
    %v285 = vld [vmem:[%s3] sm:$0xf]
    %287 = vset.pattern.permute.xlu0 0
    %288 = vperm.xlu0 %287, %v285
    %v289 = vpop.permute.xlu0 %288
    %v291 = vadd.f32 %v283, %v289
    %v292 = vadd.f32 %v284, %v289
    %v293 = vxor.u32 %v291, 2147483648
    %v294 = vxor.u32 %v292, 2147483648
    %v295 = vmul.f32 %v293, 1.442695
    %v296 = vpow.pop %v295
    %v297 = vmul.f32 %v294, 1.442695
    %v298 = vpow.pop %v297
    %v299 = vadd.f32 %v296, 1.0
    %v300 = vadd.f32 %v298, 1.0
    %v301 = vrcp.pop %v299
    %v302 = vmul.f32 1.0, %v301
    %v303 = vrcp.pop %v300
    %v304 = vmul.f32 1.0, %v303
    %v305 = vmul.f32 %v291, %v302
    %v306 = vmul.f32 %v292, %v304
    %309 = vrot.lane.b32.xlu0 %v305, 1
    %v310 = vpop.permute.xlu0 %309
    %311 = vrot.lane.b32.xlu0 %v306, 1
    %v312 = vpop.permute.xlu0 %311
    %315 = vst.msk [vmem:[#allocation3] sm:$0xf] %vm42, %v310
    %316 = vst.msk [vmem:[#allocation3 + $0x4] sm:$0xf] %vm42, %v312
    %v317 = vld [vmem:[#allocation3] sm:$0x1]
    %v318 = vld [vmem:[#allocation3 + $0x4] sm:$0x1]
    %v319 = vld [vmem:[%s4] sm:$0xf]
    %v320 = vlaneseq
    %v321 = vshrl.u32 %v320, 7
    %v322 = vsub.s32 0, %v321
    %v323 = vrot.slane %v317, %v322
    %v324 = vlaneseq
    %v325 = vshrl.u32 %v324, 7
    %v326 = vsub.s32 0, %v325
    %v327 = vrot.slane %v318, %v326
    %329 = vset.pattern.permute.xlu0 0
    %330 = vperm.xlu0 %329, %v319
    %v331 = vpop.permute.xlu0 %330
    %v333 = vmul.f32 %v323, %v331
    %v334 = vmul.f32 %v327, %v331
    %v335 = vadd.f32 %v333, 0.0
    %v336 = vadd.f32 %v334, 0.0
    %337 = vset.pattern.permute.xlu0 1
    %338 = vperm.xlu0 %337, %v319
    %v339 = vpop.permute.xlu0 %338
    %v341 = vmul.f32 %v323, %v339
    %v342 = vmul.f32 %v327, %v339
    %345 = vrot.lane.b32.xlu0 %v341, 127
    %v346 = vpop.permute.xlu0 %345
    %347 = vrot.lane.b32.xlu0 %v342, 127
    %v348 = vpop.permute.xlu0 %347
    %v351 = vadd.f32 %v335, %v346
    %v352 = vadd.f32 %v336, %v348
    %353 = vset.pattern.permute.xlu0 2
    %354 = vperm.xlu0 %353, %v319
    %v355 = vpop.permute.xlu0 %354
    %v357 = vmul.f32 %v323, %v355
    %v358 = vmul.f32 %v327, %v355
    %361 = vrot.lane.b32.xlu0 %v357, 126
    %v362 = vpop.permute.xlu0 %361
    %363 = vrot.lane.b32.xlu0 %v358, 126
    %v364 = vpop.permute.xlu0 %363
    %v367 = vadd.f32 %v351, %v362
    %v368 = vadd.f32 %v352, %v364
    %v369 = vld [vmem:[#allocation3 + $0x1] sm:$0x1]
    %v370 = vld [vmem:[#allocation3 + $0x5] sm:$0x1]
    %v371 = vlaneseq
    %v372 = vshrl.u32 %v371, 7
    %v373 = vsub.s32 0, %v372
    %v374 = vrot.slane %v369, %v373
    %v375 = vlaneseq
    %v376 = vshrl.u32 %v375, 7
    %v377 = vsub.s32 0, %v376
    %v378 = vrot.slane %v370, %v377
    %379 = vset.pattern.permute.xlu0 3
    %380 = vperm.xlu0 %379, %v319
    %v381 = vpop.permute.xlu0 %380
    %v383 = vmul.f32 %v374, %v381
    %v384 = vmul.f32 %v378, %v381
    %v385 = vadd.f32 %v367, %v383
    %v386 = vadd.f32 %v368, %v384
    %387 = vset.pattern.permute.xlu0 4
    %388 = vperm.xlu0 %387, %v319
    %v389 = vpop.permute.xlu0 %388
    %v391 = vmul.f32 %v374, %v389
    %v392 = vmul.f32 %v378, %v389
    %395 = vrot.lane.b32.xlu0 %v391, 127
    %v396 = vpop.permute.xlu0 %395
    %397 = vrot.lane.b32.xlu0 %v392, 127
    %v398 = vpop.permute.xlu0 %397
    %v401 = vadd.f32 %v385, %v396
    %v402 = vadd.f32 %v386, %v398
    %403 = vset.pattern.permute.xlu0 5
    %404 = vperm.xlu0 %403, %v319
    %v405 = vpop.permute.xlu0 %404
    %v407 = vmul.f32 %v374, %v405
    %v408 = vmul.f32 %v378, %v405
    %411 = vrot.lane.b32.xlu0 %v407, 126
    %v412 = vpop.permute.xlu0 %411
    %413 = vrot.lane.b32.xlu0 %v408, 126
    %v414 = vpop.permute.xlu0 %413
    %v417 = vadd.f32 %v401, %v412
    %v418 = vadd.f32 %v402, %v414
    %v419 = vld [vmem:[#allocation3 + $0x2] sm:$0x1]
    %v420 = vld [vmem:[#allocation3 + $0x6] sm:$0x1]
    %v421 = vlaneseq
    %v422 = vshrl.u32 %v421, 7
    %v423 = vsub.s32 0, %v422
    %v424 = vrot.slane %v419, %v423
    %v425 = vlaneseq
    %v426 = vshrl.u32 %v425, 7
    %v427 = vsub.s32 0, %v426
    %v428 = vrot.slane %v420, %v427
    %429 = vset.pattern.permute.xlu0 6
    %430 = vperm.xlu0 %429, %v319
    %v431 = vpop.permute.xlu0 %430
    %v433 = vmul.f32 %v424, %v431
    %v434 = vmul.f32 %v428, %v431
    %v435 = vadd.f32 %v417, %v433
    %v436 = vadd.f32 %v418, %v434
    %437 = vset.pattern.permute.xlu0 7
    %438 = vperm.xlu0 %437, %v319
    %v439 = vpop.permute.xlu0 %438
    %v441 = vmul.f32 %v424, %v439
    %v442 = vmul.f32 %v428, %v439
    %445 = vrot.lane.b32.xlu0 %v441, 127
    %v446 = vpop.permute.xlu0 %445
    %447 = vrot.lane.b32.xlu0 %v442, 127
    %v448 = vpop.permute.xlu0 %447
    %v451 = vadd.f32 %v435, %v446
    %v452 = vadd.f32 %v436, %v448
    %453 = vset.pattern.permute.xlu0 8
    %454 = vperm.xlu0 %453, %v319
    %v455 = vpop.permute.xlu0 %454
    %v457 = vmul.f32 %v424, %v455
    %v458 = vmul.f32 %v428, %v455
    %461 = vrot.lane.b32.xlu0 %v457, 126
    %v462 = vpop.permute.xlu0 %461
    %463 = vrot.lane.b32.xlu0 %v458, 126
    %v464 = vpop.permute.xlu0 %463
    %v467 = vadd.f32 %v451, %v462
    %v468 = vadd.f32 %v452, %v464
    %v469 = vld [vmem:[#allocation3 + $0x3] sm:$0x1]
    %v470 = vld [vmem:[#allocation3 + $0x7] sm:$0x1]
    %v471 = vlaneseq
    %v472 = vshrl.u32 %v471, 7
    %v473 = vsub.s32 0, %v472
    %v474 = vrot.slane %v469, %v473
    %v475 = vlaneseq
    %v476 = vshrl.u32 %v475, 7
    %v477 = vsub.s32 0, %v476
    %v478 = vrot.slane %v470, %v477
    %479 = vset.pattern.permute.xlu0 9
    %480 = vperm.xlu0 %479, %v319
    %v481 = vpop.permute.xlu0 %480
    %v483 = vmul.f32 %v474, %v481
    %v484 = vmul.f32 %v478, %v481
    %v485 = vadd.f32 %v467, %v483
    %v486 = vadd.f32 %v468, %v484
    %487 = vset.pattern.permute.xlu0 10
    %488 = vperm.xlu0 %487, %v319
    %v489 = vpop.permute.xlu0 %488
    %v491 = vmul.f32 %v474, %v489
    %v492 = vmul.f32 %v478, %v489
    %495 = vrot.lane.b32.xlu0 %v491, 127
    %v496 = vpop.permute.xlu0 %495
    %497 = vrot.lane.b32.xlu0 %v492, 127
    %v498 = vpop.permute.xlu0 %497
    %v501 = vadd.f32 %v485, %v496
    %v502 = vadd.f32 %v486, %v498
    %503 = vset.pattern.permute.xlu0 11
    %504 = vperm.xlu0 %503, %v319
    %v505 = vpop.permute.xlu0 %504
    %v507 = vmul.f32 %v474, %v505
    %v508 = vmul.f32 %v478, %v505
    %511 = vrot.lane.b32.xlu0 %v507, 126
    %v512 = vpop.permute.xlu0 %511
    %513 = vrot.lane.b32.xlu0 %v508, 126
    %v514 = vpop.permute.xlu0 %513
    %v517 = vadd.f32 %v501, %v512
    %v518 = vadd.f32 %v502, %v514
    %v519 = vsel %vm247, %v517, 0.0
    %520 = vadd.xlane.f32.xlu0 %v519
    %v521 = vpop.xlane.xlu0 %520
    %v522 = vsel %vm247, %v518, 0.0
    %523 = vadd.xlane.f32.xlu0 %v522
    %v524 = vpop.xlane.xlu0 %523
    %v525 = vsel %vm254, %v521, 0.0
    %v526 = vsel %vm254, %v524, 0.0
    %v527 = vadd.f32 %v525, %v526
    %v528 = vmul.f32 %v527, 0.03125
    %v529 = vsub.f32 %v517, %v528
    %v530 = vsub.f32 %v518, %v528
    %v531 = vmul.f32 %v529, %v529
    %v532 = vmul.f32 %v530, %v530
    %v533 = vsel %vm247, %v531, 0.0
    %534 = vadd.xlane.f32.xlu0 %v533
    %v535 = vpop.xlane.xlu0 %534
    %v536 = vsel %vm247, %v532, 0.0
    %537 = vadd.xlane.f32.xlu0 %v536
    %v538 = vpop.xlane.xlu0 %537
    %v539 = vsel %vm254, %v535, 0.0
    %v540 = vsel %vm254, %v538, 0.0
    %v541 = vadd.f32 %v539, %v540
    %v542 = vmul.f32 %v541, 0.03125
    %v543 = vadd.f32 %v542, 1e-05
    %v544 = vrsqrt.pop %v543
    %v545 = vmul.f32 %v529, %v544
    %v546 = vmul.f32 %v530, %v544
    %v547 = vld [vmem:[%s5] sm:$0xf]
    %549 = vset.pattern.permute.xlu0 0
    %550 = vperm.xlu0 %549, %v547
    %v551 = vpop.permute.xlu0 %550
    %v553 = vmul.f32 %v545, %v551
    %v554 = vmul.f32 %v546, %v551
    %v555 = vld [vmem:[%s6] sm:$0xf]
    %557 = vset.pattern.permute.xlu0 0
    %558 = vperm.xlu0 %557, %v555
    %v559 = vpop.permute.xlu0 %558
    %v561 = vadd.f32 %v553, %v559
    %v562 = vadd.f32 %v554, %v559
    %v563 = vld [vmem:[%s0] sm:$0xf]
    %v564 = vld [vmem:[%s0 + $0x4] sm:$0xf]
    %v565 = vadd.f32 %v561, %v563
    %v566 = vadd.f32 %v562, %v564
    %v567 = vxor.u32 %v565, 2147483648
    %v568 = vxor.u32 %v566, 2147483648
    %v569 = vmul.f32 %v567, 1.442695
    %v570 = vpow.pop %v569
    %v571 = vmul.f32 %v568, 1.442695
    %v572 = vpow.pop %v571
    %v573 = vadd.f32 %v570, 1.0
    %v574 = vadd.f32 %v572, 1.0
    %v575 = vrcp.pop %v573
    %v576 = vmul.f32 1.0, %v575
    %v577 = vrcp.pop %v574
    %v578 = vmul.f32 1.0, %v577
    %v579 = vmul.f32 %v565, %v576
    %v580 = vmul.f32 %v566, %v578
    %581 = vst.msk [vmem:[#allocation4] sm:$0xf] %vm247, %v579
    %582 = vst.msk [vmem:[#allocation4 + $0x4] sm:$0xf] %vm247, %v580
    // Predicated region
    $region30: #{tpu_custom_call.1} parent=1 // pred_check
      _
    $region31: #{tpu_custom_call.1} parent=1 // pred_check_branch
      %584 = sbr.rel (0) target = $region33
    $region32: #{tpu_custom_call.1} parent=1 // pred_region
      %s586 = ssub.s32 128, 128
      %587 = vsyncadd [#allocation5], %s586
      %s588 = sshll.u32 [#allocation4], 4
      %s589 = int_to_ptr.vmem [resolvable:$true] %s588
      %594 = dma.vmem_to_hbm [thread:$0]  %s589, 128, %s7, [#allocation5], 64, 64, 4
    $region33: #{tpu_custom_call.1} parent=1 // pred_fallthru
      _
    // Predicated region
    $region34: #{tpu_custom_call.1} parent=1 // pred_check
      _
    $region35: #{tpu_custom_call.1} parent=1 // pred_check_branch
      %596 = sbr.rel (0) target = $region37
    $region36: #{tpu_custom_call.1} parent=1 // pred_region
      %597 = dma.done [#allocation5], 128
    $region37: #{tpu_custom_call.1} parent=1 // pred_fallthru
      _
    %598 = vsyncpa [#allocation5], 1

</llo_original>
